<compile_context>
chip_gen: v7x
topology: tpu7x:2x2x1
jax: 0.10.0
libtpu: 0.0.40
codegen_flags: <defaults>
</compile_context>

<pallas_src>
import math

import jax
import jax.numpy as jnp
from jax.experimental import pallas as pl
from jax.experimental.pallas import tpu as pltpu


def _copy_kernel(x_ref, o_ref):
    # Pure contiguous copy of the current (row_tile, lane_tile) block.
    o_ref[...] = x_ref[...]


_LANE_CANDIDATES = (8192, 4096, 2048, 1024, 512, 256, 128)
# ~2 MiB per block: double-buffered in + out stays <= 8 MiB, safe under the
# default scoped-VMEM limit on every TPU generation, and big enough that the
# per-grid-step overhead is amortized (>= ~85% of memcpy roofline).
_TARGET_BLOCK_BYTES = 2 * 1024 * 1024


def merge_temporal_dim(x_seq: jax.Array) -> jax.Array:
    """Pallas equivalent of x_seq.flatten(0, 1).contiguous().

    x_seq: (T, B, *rest) -> (T*B, *rest)
    """
    if x_seq.ndim < 2:
        raise ValueError("merge_temporal_dim expects at least 2 dims (T, B, ...)")
    T, B = x_seq.shape[0], x_seq.shape[1]
    rest = x_seq.shape[2:]
    out_shape = (T * B,) + rest

    total = math.prod(x_seq.shape)
    if total == 0:
        return x_seq.reshape(out_shape)

    itemsize = jnp.dtype(x_seq.dtype).itemsize
    sublane = {4: 8, 2: 16, 1: 32}.get(itemsize, 8)

    # Lane-dense factorization: total = rows * lane_tile, lane_tile a large
    # multiple of 128, rows a multiple of the dtype's sublane packing.
    lane_tile = None
    rows = None
    for cand in _LANE_CANDIDATES:
        if total % cand == 0 and (total // cand) % sublane == 0:
            lane_tile = cand
            rows = total // cand
            break

    if lane_tile is None:
        # No clean lane-dense tiling.  flatten(0,1) of a contiguous JAX array is
        # a metadata-only reshape and already satisfies `.contiguous()`, so skip
        # the copy kernel entirely (also removes 2x tensor bytes of DMA traffic).
        return x_seq.reshape(out_shape)

    # Bound block rows by the VMEM budget (double-buffered in + out).
    bytes_per_row = lane_tile * itemsize
    max_rows = max(
        sublane, (_TARGET_BLOCK_BYTES // bytes_per_row) // sublane * sublane
    )

    # Largest divisor of `rows` that is a multiple of `sublane`, fits the
    # budget, and (when possible) leaves >= 2 grid steps so megacore (v7x's two
    # TensorCores) can split this mem-bound copy.
    row_tile = None
    for d in range(min(max_rows, rows), sublane - 1, -sublane):
        if rows % d == 0 and rows // d >= 2:
            row_tile = d
            break
    if row_tile is None:
        row_tile = rows  # tiny input: single block, still VMEM-safe.

    grid = (rows // row_tile,)
    x2d = x_seq.reshape(rows, lane_tile)  # metadata-only re-view

    out2d = pl.pallas_call(
        _copy_kernel,
        out_shape=jax.ShapeDtypeStruct((rows, lane_tile), x_seq.dtype),
        grid_spec=pltpu.PrefetchScalarGridSpec(
            num_scalar_prefetch=0,
            grid=grid,
            # If xprof ever shows exposed DMA after these block sizes, sweep
            # pipeline_mode=pl.Buffered(3) on this input spec.
            in_specs=[pl.BlockSpec((row_tile, lane_tile), lambda i: (i, 0))],
            out_specs=pl.BlockSpec((row_tile, lane_tile), lambda i: (i, 0)),
        ),
        compiler_params=pltpu.CompilerParams(
            dimension_semantics=("parallel",),
        ),
    )(x2d)

    return out2d.reshape(out_shape)


if __name__ == "__main__":
    key = jax.random.PRNGKey(0)

    # Test 1: f32, shapes consistent with a spiking-net temporal batch.
    T, B, C, H, W = 4, 2, 4, 8, 16
    k1, k2 = jax.random.split(key)
    x_seq = jax.random.normal(k1, (T, B, C, H, W), dtype=jnp.float32)
    out = jax.block_until_ready(merge_temporal_dim(x_seq))
    ref = x_seq.reshape((T * B, C, H, W))
    assert out.shape == (T * B, C, H, W), out.shape
    assert out.dtype == x_seq.dtype
    assert jnp.array_equal(out, ref), "f32 mismatch vs reference flatten"

    # Test 2: bf16 (exercises the 16-row sublane packing path).
    T2, B2, C2, H2, W2 = 4, 2, 8, 16, 16
    x_seq2 = jax.random.normal(k2, (T2, B2, C2, H2, W2), dtype=jnp.bfloat16)
    out2 = jax.block_until_ready(merge_temporal_dim(x_seq2))
    ref2 = x_seq2.reshape((T2 * B2, C2, H2, W2))
    assert out2.shape == (T2 * B2, C2, H2, W2), out2.shape
    assert out2.dtype == x_seq2.dtype
    assert jnp.array_equal(out2, ref2), "bf16 mismatch vs reference flatten"

    print("KERNEL_OK")
</pallas_src>

<mosaic_0001>
module attributes {stable_mosaic.version = 11 : i64} {
  func.func @_copy_kernel(%arg0: i32, %arg1: memref<8x512xf32, #tpu.memory_space<vmem>>, %arg2: memref<8x512xf32, #tpu.memory_space<vmem>>) attributes {dimension_semantics = [#tpu.dimension_semantics<parallel>], iteration_bounds = array<i64: 1>, scalar_prefetch = 0 : i64, scratch_operands = 0 : i64, tpu.core_type = #tpu.core_type<tc>, window_params = [{transform_indices = @transform_0, window_bounds = array<i64: 8, 512>}, {transform_indices = @transform_1, window_bounds = array<i64: 8, 512>}]} {
    %c0 = arith.constant 0 : index
    %c0_0 = arith.constant 0 : index
    %0 = vector.load %arg1[%c0, %c0_0] : memref<8x512xf32, #tpu.memory_space<vmem>>, vector<8x512xf32>
    %c0_1 = arith.constant 0 : index
    %c0_2 = arith.constant 0 : index
    %1 = vector.load %arg2[%c0_1, %c0_2] : memref<8x512xf32, #tpu.memory_space<vmem>>, vector<8x512xf32>
    tpu.vector_store %arg2[%c0_1, %c0_2], %0 {strides = array<i32>} : memref<8x512xf32, #tpu.memory_space<vmem>>, vector<8x512xf32>,
    return
  }
  func.func @transform_0(%arg0: i32) -> (i32, i32) {
    %c0_i32 = arith.constant 0 : i32
    %c0_i32_0 = arith.constant 0 : i32
    return %arg0, %c0_i32 : i32, i32
  }
  func.func @transform_1(%arg0: i32) -> (i32, i32) {
    %c0_i32 = arith.constant 0 : i32
    %c0_i32_0 = arith.constant 0 : i32
    return %arg0, %c0_i32 : i32, i32
  }
}

</mosaic_0001>

<llo_original>
// kernel: tpu_custom_call.1
$region0: #{tpu_custom_call.1}
  #allocation0 [shape = 'u32[]', space=smem, size = 0x4, offset = 0x4, fixed_abs, tag = 'smem constant byte address 0x4 - core index']
  #allocation1 [shape = 'u32[144,128]{1,0:T(1,128)}', space=vmem, size = 0x12000, scoped, tag = 'internal scratch']
  %s0 = inlined_call_operand.hbm [shape: f32[8,512], index: 0, kind: input, shape index: {}]
  %s1 = inlined_call_operand.hbm [shape: f32[8,512], index: 1, kind: output, shape index: {}]
  %s2 = sld [smem:[#allocation0]]
  $region18: #{tpu_custom_call.1} parent=0
    _
  %s4 = ssub.s32 1, %s2
  %s5 = scalar_select 0, %s4, %s2
  $region1: #{tpu_custom_call.1} parent=0
    #allocation2 [shape = 'u8[16384]{0}', space=vmem, size = 0x4000, scoped, tag = 'input window, operand 0, single buffered']
    #allocation3 [shape = 's32[1]{0}', space=sflag, size = 0x4, scoped, tag = 'scoped memory for tpu_custom_call.1']
    #allocation4 [shape = 's32[1]{0}', space=sflag, size = 0x4, scoped, tag = 'scoped memory for tpu_custom_call.1']
    #allocation5 [shape = 'u8[16384]{0}', space=vmem, size = 0x4000, scoped, tag = 'output window, operand 0, single buffered']
    %6 = vsyncpa [#allocation3], 0
    %7 = vsyncpa [#allocation4], 0
    // Predicated region
    $region2: #{tpu_custom_call.1} parent=1 // pred_check
      _
    $region3: #{tpu_custom_call.1} parent=1 // pred_check_branch
      %9 = sbr.rel (0) target = $region5
    $region4: #{tpu_custom_call.1} parent=1 // pred_region
      %s11 = ssub.s32 512, 512
      %12 = vsyncadd [#allocation3], %s11
      %s14 = sshll.u32 [#allocation2], 4
      %s15 = int_to_ptr.vmem [resolvable:$true] %s14
      %17 = dma.hbm_to_vmem [thread:$0]  %s0, 512, %s15, [#allocation3]
    $region5: #{tpu_custom_call.1} parent=1 // pred_fallthru
      _
    // Predicated region
    $region6: #{tpu_custom_call.1} parent=1 // pred_check
      _
    $region7: #{tpu_custom_call.1} parent=1 // pred_check_branch
      %19 = sbr.rel (0) target = $region9
    $region8: #{tpu_custom_call.1} parent=1 // pred_region
      %20 = dma.done [#allocation3], 512
    $region9: #{tpu_custom_call.1} parent=1 // pred_fallthru
      _
    %v21 = vld [vmem:[#allocation2] sm:$0xff]
    %v22 = vld [vmem:[#allocation2 + $0x8] sm:$0xff]
    %v23 = vld [vmem:[#allocation2 + $0x10] sm:$0xff]
    %v24 = vld [vmem:[#allocation2 + $0x18] sm:$0xff]
    %25 = vst [vmem:[#allocation5] sm:$0xff] %v21
    %26 = vst [vmem:[#allocation5 + $0x8] sm:$0xff] %v22
    %27 = vst [vmem:[#allocation5 + $0x10] sm:$0xff] %v23
    %28 = vst [vmem:[#allocation5 + $0x18] sm:$0xff] %v24
    // Predicated region
    $region10: #{tpu_custom_call.1} parent=1 // pred_check
      _
    $region11: #{tpu_custom_call.1} parent=1 // pred_check_branch
      %30 = sbr.rel (0) target = $region13
    $region12: #{tpu_custom_call.1} parent=1 // pred_region
      %s32 = ssub.s32 512, 512
      %33 = vsyncadd [#allocation4], %s32
      %s35 = sshll.u32 [#allocation5], 4
      %s36 = int_to_ptr.vmem [resolvable:$true] %s35
      %38 = dma.vmem_to_hbm [thread:$0]  %s36, 512, %s1, [#allocation4]
    $region13: #{tpu_custom_call.1} parent=1 // pred_fallthru
      _
    // Predicated region
    $region14: #{tpu_custom_call.1} parent=1 // pred_check
      _
    $region15: #{tpu_custom_call.1} parent=1 // pred_check_branch
      %40 = sbr.rel (0) target = $region17
    $region16: #{tpu_custom_call.1} parent=1 // pred_region
      %41 = dma.done [#allocation4], 512
    $region17: #{tpu_custom_call.1} parent=1 // pred_fallthru
      _
    %42 = vsyncpa [#allocation3], 1
    %43 = vsyncpa [#allocation4], 1

</llo_original>
